<compile_context>
chip_gen: v7x
topology: tpu7x:2x2x1
jax: 0.10.0
libtpu: 0.0.40
codegen_flags: <defaults>
</compile_context>

<pallas_src>
import functools

import jax
import jax.numpy as jnp
from jax.experimental import pallas as pl
from jax.experimental.pallas import tpu as pltpu


def _combine_attention_kernel(x_ref, w1_ref, b1_ref, w2_ref, out_ref, attn_ref,
                              *, K, cn):
    # x_ref   : (tile_n*K, D)  flattened stacked embeddings (native dtype).
    #           Row order is n-major / k-minor (row = n*K + k) -- this matches
    #           the wrapper's row-major reshape; do not change one without the
    #           other.
    # w1_ref  : (D, Hp)   first Linear weight, H zero-padded to Hp (input dtype)
    # b1_ref  : (1, Hp)   first Linear bias, zero-padded (f32)
    # w2_ref  : (1, Hp)   second Linear weight as a row, zero-padded (f32)
    # out_ref : (tile_n, D)    combined embedding (input dtype)
    # attn_ref: (tile_n, Kp)   lane-dense attention weights; cols >= K are zero
    tile_n, Kp = attn_ref.shape
    n_chunks = tile_n // cn

    w1 = w1_ref[...]            # native dtype -> fast MXU path, f32 accumulate
    b1 = b1_ref[...]
    w2 = w2_ref[...]
    lane = jax.lax.broadcasted_iota(jnp.int32, (cn, Kp), 1)   # hoisted

    def chunk_body(c, carry):
        n0 = pl.multiple_of(c * cn, cn)            # first batch row of chunk
        r0 = pl.multiple_of(c * (cn * K), cn * K)  # first flattened row

        # Per stack index k the chunk's rows are r0+k, r0+k+K, ... .  Load each
        # k-slice ONCE from the already-DMA'd VMEM block and reuse it for both
        # the projection and the weighted sum.
        xs = [x_ref[pl.ds(r0 + k, cn, stride=K), :] for k in range(K)]

        # scores: Linear(D->H) -> tanh -> Linear(H->1).  Width-1 second Linear
        # = VPU multiply + lane reduction.  h stays small (cn, Hp) -> in vregs.
        scores = []
        for k in range(K):
            h = jnp.tanh(
                jnp.dot(xs[k], w1, preferred_element_type=jnp.float32) + b1)
            scores.append(jnp.sum(h * w2, axis=-1, keepdims=True))  # (cn,1) f32

        # Softmax over K done column-wise; no (cn, K) relayout needed.
        m = scores[0]
        for k in range(1, K):
            m = jnp.maximum(m, scores[k])
        ps = [jnp.exp(s - m) for s in scores]
        denom = ps[0]
        for k in range(1, K):
            denom = denom + ps[k]
        inv = 1.0 / denom                      # exact: attn is user-visible
        attn_cols = [p * inv for p in ps]      # K columns of (cn, 1) f32

        # Weighted sum over K (reuses xs; (cn,1) columns broadcast over lanes).
        acc = attn_cols[0] * xs[0].astype(jnp.float32)
        for k in range(1, K):
            acc = acc + attn_cols[k] * xs[k].astype(jnp.float32)
        out_ref[pl.ds(n0, cn), :] = acc.astype(out_ref.dtype)

        # Lane-dense attn block: column k holds attn_k, columns >= K are zero.
        attn_blk = jnp.zeros((cn, Kp), jnp.float32)
        for k in range(K):
            attn_blk = jnp.where(lane == k, attn_cols[k], attn_blk)
        attn_ref[pl.ds(n0, cn), :] = attn_blk
        return carry

    jax.lax.fori_loop(0, n_chunks, chunk_body, None)


def combine_attention(stacked_emb, w1, b1, w2, *, tile_n=None, chunk_rows=512,
                      interpret=False):
    """Pallas TPU implementation of CombineAttention.forward.

    stacked_emb : (N, K, D)   softmax is taken over K (dim=1, as in PyTorch)
    w1          : (D, H)      first Linear weight (transposed vs torch layout)
    b1          : (H,) or (1, H)
    w2          : (H,) or (H, 1)

    Returns (combined (N, D) in the input dtype, norm_attn_score (N, K, 1) f32).
    """
    N, K, D = stacked_emb.shape
    H = w1.shape[1]
    x_dtype = stacked_emb.dtype
    itemsize = jnp.dtype(x_dtype).itemsize

    # ---- lane-dense weights: zero-pad H to a multiple of 128 ----------------
    # w1 stays in the input dtype (native bf16 x bf16 MXU path, f32 accumulate);
    # b1/w2 are used post-MXU on the VPU and stay f32.  Padded columns give
    # tanh(0)=0 and multiply by 0, so results are unchanged.
    Hp = max(128, pl.cdiv(H, 128) * 128)
    w1_p = jnp.zeros((D, Hp), x_dtype).at[:, :H].set(w1.astype(x_dtype))
    b1_p = jnp.zeros((1, Hp), jnp.float32).at[:, :H].set(
        b1.astype(jnp.float32).reshape(1, H))
    w2_p = jnp.zeros((1, Hp), jnp.float32).at[:, :H].set(
        w2.astype(jnp.float32).reshape(1, H))

    # ---- batch tiling --------------------------------------------------------
    # ~8 MiB x blocks amortize the ~0.35us per-grid-step overhead (HBM-bound
    # kernel); 2 x-bufs + out/attn bufs + weights stay well under a 48 MiB
    # VMEM budget, which is safe on v5e/v6e (128 MiB) and v7x (64 MiB).
    if tile_n is None:
        rows_target = max(8 * K, min(8192, (8 << 20) // max(1, D * itemsize)))
        tile_n = max(8, (rows_target // K) // 8 * 8)
    tile_n = max(8, (tile_n // 8) * 8)           # sublane dims multiple of 8
    n_pad8 = pl.cdiv(N, 8) * 8
    tile_n = min(tile_n, n_pad8)
    # If the whole (large) batch would fit in a single big tile, split once so
    # both v7x TensorCores get work; small batches keep one tile (fewest,
    # largest tiles are strictly better on single-core v5e/v6e).
    if n_pad8 <= tile_n and tile_n * K * D * itemsize >= (8 << 20):
        tile_n = max(8, (pl.cdiv(tile_n, 2) // 8) * 8)

    n_pad = pl.cdiv(N, tile_n) * tile_n          # ragged batch -> zero pad
    grid_n = n_pad // tile_n

    # In-kernel chunking keeps the (rows, Hp) f32 projection intermediate in
    # vregs instead of spilling block-sized data to VMEM.
    cn = min(tile_n, max(8, (max(8, chunk_rows) // K) // 8 * 8))
    while tile_n % cn:                           # tile_n % 8 == 0 -> terminates
        cn -= 8

    x = stacked_emb
    if n_pad != N:
        x = jnp.pad(x, ((0, n_pad - N), (0, 0), (0, 0)))
    x_flat = x.reshape(n_pad * K, D)             # free row-major reshape (XLA)

    Kp = max(128, pl.cdiv(K, 128) * 128)         # lane-dense attn output width

    cost = pl.CostEstimate(
        flops=2 * n_pad * K * D * Hp + 4 * n_pad * K * Hp + 2 * n_pad * K * D,
        transcendentals=n_pad * K * (Hp + 1),
        bytes_accessed=(n_pad * K * D * itemsize          # x
                        + n_pad * D * itemsize            # combined out
                        + n_pad * Kp * 4                  # attn out (padded)
                        + D * Hp * itemsize + 2 * Hp * 4),
    )

    kernel = functools.partial(_combine_attention_kernel, K=K, cn=cn)

    out, attn = pl.pallas_call(
        kernel,
        out_shape=(
            jax.ShapeDtypeStruct((n_pad, D), x_dtype),
            jax.ShapeDtypeStruct((n_pad, Kp), jnp.float32),
        ),
        grid_spec=pltpu.PrefetchScalarGridSpec(
            num_scalar_prefetch=0,
            grid=(grid_n,),
            in_specs=[
                pl.BlockSpec((tile_n * K, D), lambda i: (i, 0)),
                pl.BlockSpec((D, Hp), lambda i: (0, 0)),
                pl.BlockSpec((1, Hp), lambda i: (0, 0)),
                pl.BlockSpec((1, Hp), lambda i: (0, 0)),
            ],
            out_specs=[
                pl.BlockSpec((tile_n, D), lambda i: (i, 0)),
                pl.BlockSpec((tile_n, Kp), lambda i: (i, 0)),
            ],
        ),
        compiler_params=pltpu.CompilerParams(
            dimension_semantics=("parallel",),
            vmem_limit_bytes=48 * 1024 * 1024,
        ),
        cost_estimate=cost,
        interpret=interpret,
    )(x_flat, w1_p, b1_p, w2_p)

    # Zero-padded batch rows produce uniform (1/K) attn and zero combined rows;
    # they are sliced off here.  PyTorch returns norm_attn_score as (N, K, 1).
    out = out[:N]
    attn = attn[:N, :K]
    return out, attn.reshape(N, K, 1)


def combine_attention_ref(x, w1, b1, w2):
    # Pure-JAX reference mirroring the PyTorch module.
    s = jnp.tanh(jnp.einsum("nkd,dh->nkh", x, w1) + b1)          # (N, K, H)
    scores = jnp.einsum("nkh,h->nk", s, w2)[..., None]           # (N, K, 1)
    attn = jax.nn.softmax(scores, axis=1)                        # (N, K, 1)
    return (attn * x).sum(axis=1), attn


if __name__ == "__main__":
    # Shapes consistent with the module: batch=8, K=4 stacked embeddings,
    # in_size=32, hidden_size=16.
    N, K, D, H = 8, 4, 32, 16

    key = jax.random.PRNGKey(0)
    kx, kw1, kb1, kw2, kx2 = jax.random.split(key, 5)

    x = jax.random.normal(kx, (N, K, D), dtype=jnp.float32)
    w1 = jax.random.uniform(kw1, (D, H), jnp.float32, -1.0, 1.0) / jnp.sqrt(D)
    b1 = jax.random.uniform(kb1, (H,), jnp.float32, -1.0, 1.0) / jnp.sqrt(D)
    w2 = jax.random.uniform(kw2, (H,), jnp.float32, -1.0, 1.0) / jnp.sqrt(H)

    out, attn = combine_attention(x, w1, b1, w2)
    out, attn = jax.block_until_ready((out, attn))

    out_ref, attn_ref = combine_attention_ref(x, w1, b1, w2)
    assert out.shape == (N, D) and attn.shape == (N, K, 1)
    assert jnp.allclose(attn, attn_ref, atol=1e-4, rtol=1e-4), "attn mismatch"
    assert jnp.allclose(out, out_ref, atol=1e-4, rtol=1e-4), "out mismatch"

    # Multi-tile + ragged-batch (zero-padding) + multi-chunk path.
    N2 = 40
    x2 = jax.random.normal(kx2, (N2, K, D), jnp.float32)
    out2, attn2 = combine_attention(x2, w1, b1, w2, tile_n=16, chunk_rows=32)
    out2, attn2 = jax.block_until_ready((out2, attn2))
    o2_ref, a2_ref = combine_attention_ref(x2, w1, b1, w2)
    assert out2.shape == (N2, D) and attn2.shape == (N2, K, 1)
    assert jnp.allclose(attn2, a2_ref, atol=1e-4, rtol=1e-4), "attn2 mismatch"
    assert jnp.allclose(out2, o2_ref, atol=1e-4, rtol=1e-4), "out2 mismatch"

    print("KERNEL_OK")
</pallas_src>

<mosaic_0001>
module attributes {stable_mosaic.version = 11 : i64} {
  func.func @_combine_attention_kernel(%arg0: i32, %arg1: memref<32x32xf32, #tpu.memory_space<vmem>>, %arg2: memref<32x128xf32, #tpu.memory_space<vmem>>, %arg3: memref<1x128xf32, #tpu.memory_space<vmem>>, %arg4: memref<1x128xf32, #tpu.memory_space<vmem>>, %arg5: memref<8x32xf32, #tpu.memory_space<vmem>>, %arg6: memref<8x128xf32, #tpu.memory_space<vmem>>) attributes {dimension_semantics = [#tpu.dimension_semantics<parallel>], iteration_bounds = array<i64: 1>, scalar_prefetch = 0 : i64, scratch_operands = 0 : i64, tpu.core_type = #tpu.core_type<tc>, window_params = [{transform_indices = @transform_0, window_bounds = array<i64: 32, 32>}, {pipeline_mode = #tpu.pipeline_mode<synchronous>, transform_indices = @transform_1, window_bounds = array<i64: 32, 128>}, {pipeline_mode = #tpu.pipeline_mode<synchronous>, transform_indices = @transform_2, window_bounds = array<i64: 1, 128>}, {pipeline_mode = #tpu.pipeline_mode<synchronous>, transform_indices = @transform_3, window_bounds = array<i64: 1, 128>}, {transform_indices = @transform_4, window_bounds = array<i64: 8, 32>}, {transform_indices = @transform_5, window_bounds = array<i64: 8, 128>}]} {
    %c0 = arith.constant 0 : index
    %c0_0 = arith.constant 0 : index
    %0 = vector.load %arg2[%c0, %c0_0] : memref<32x128xf32, #tpu.memory_space<vmem>>, vector<32x128xf32>
    %c0_1 = arith.constant 0 : index
    %c0_2 = arith.constant 0 : index
    %1 = vector.load %arg3[%c0_1, %c0_2] : memref<1x128xf32, #tpu.memory_space<vmem>>, vector<1x128xf32>
    %c0_3 = arith.constant 0 : index
    %c0_4 = arith.constant 0 : index
    %2 = vector.load %arg4[%c0_3, %c0_4] : memref<1x128xf32, #tpu.memory_space<vmem>>, vector<1x128xf32>
    %3 = tpu.iota {dimensions = array<i32: 1>} : vector<8x128xi32>
    %c0_i32 = arith.constant 0 : i32
    %c8_i32 = arith.constant 8 : i32
    %4 = arith.muli %c0_i32, %c8_i32 : i32
    %5 = tpu.assume_multiple %4, 8 : i32
    %c32_i32 = arith.constant 32 : i32
    %6 = arith.muli %c0_i32, %c32_i32 : i32
    %7 = tpu.assume_multiple %6, 32 : i32
    %c0_i32_5 = arith.constant 0 : i32
    %8 = arith.addi %7, %c0_i32_5 : i32
    %9 = arith.index_cast %8 : i32 to index
    %c0_6 = arith.constant 0 : index
    %10 = tpu.strided_load %arg1[%9, %c0_6] {strides = array<i32: 4, 1>} : memref<32x32xf32, #tpu.memory_space<vmem>>, vector<8x32xf32>
    %c1_i32 = arith.constant 1 : i32
    %11 = arith.addi %7, %c1_i32 : i32
    %12 = arith.index_cast %11 : i32 to index
    %c0_7 = arith.constant 0 : index
    %13 = tpu.strided_load %arg1[%12, %c0_7] {strides = array<i32: 4, 1>} : memref<32x32xf32, #tpu.memory_space<vmem>>, vector<8x32xf32>
    %c2_i32 = arith.constant 2 : i32
    %14 = arith.addi %7, %c2_i32 : i32
    %15 = arith.index_cast %14 : i32 to index
    %c0_8 = arith.constant 0 : index
    %16 = tpu.strided_load %arg1[%15, %c0_8] {strides = array<i32: 4, 1>} : memref<32x32xf32, #tpu.memory_space<vmem>>, vector<8x32xf32>
    %c3_i32 = arith.constant 3 : i32
    %17 = arith.addi %7, %c3_i32 : i32
    %18 = arith.index_cast %17 : i32 to index
    %c0_9 = arith.constant 0 : index
    %19 = tpu.strided_load %arg1[%18, %c0_9] {strides = array<i32: 4, 1>} : memref<32x32xf32, #tpu.memory_space<vmem>>, vector<8x32xf32>
    %cst = arith.constant dense<0.000000e+00> : vector<8x128xf32>
    %20 = tpu.matmul %10, %0, %cst {dimension_numbers = #tpu.dot_dimension_numbers<[1], [0], [0], [1], [0, 0, 1, 1], [], []>} : vector<8x32xf32>, vector<32x128xf32>, vector<8x128xf32> -> vector<8x128xf32>
    %21 = vector.broadcast %1 : vector<1x128xf32> to vector<8x128xf32>
    %22 = arith.addf %20, %21 : vector<8x128xf32>
    %23 = math.tanh %22 : vector<8x128xf32>
    %24 = vector.broadcast %2 : vector<1x128xf32> to vector<8x128xf32>
    %25 = arith.mulf %23, %24 : vector<8x128xf32>
    %cst_10 = arith.constant dense<0.000000e+00> : vector<8xf32>
    %26 = vector.multi_reduction <add>, %25, %cst_10 [1] : vector<8x128xf32> to vector<8xf32>
    %27 = vector.shape_cast %26 : vector<8xf32> to vector<8x1xf32>
    %cst_11 = arith.constant dense<0.000000e+00> : vector<8x128xf32>
    %28 = tpu.matmul %13, %0, %cst_11 {dimension_numbers = #tpu.dot_dimension_numbers<[1], [0], [0], [1], [0, 0, 1, 1], [], []>} : vector<8x32xf32>, vector<32x128xf32>, vector<8x128xf32> -> vector<8x128xf32>
    %29 = vector.broadcast %1 : vector<1x128xf32> to vector<8x128xf32>
    %30 = arith.addf %28, %29 : vector<8x128xf32>
    %31 = math.tanh %30 : vector<8x128xf32>
    %32 = vector.broadcast %2 : vector<1x128xf32> to vector<8x128xf32>
    %33 = arith.mulf %31, %32 : vector<8x128xf32>
    %cst_12 = arith.constant dense<0.000000e+00> : vector<8xf32>
    %34 = vector.multi_reduction <add>, %33, %cst_12 [1] : vector<8x128xf32> to vector<8xf32>
    %35 = vector.shape_cast %34 : vector<8xf32> to vector<8x1xf32>
    %cst_13 = arith.constant dense<0.000000e+00> : vector<8x128xf32>
    %36 = tpu.matmul %16, %0, %cst_13 {dimension_numbers = #tpu.dot_dimension_numbers<[1], [0], [0], [1], [0, 0, 1, 1], [], []>} : vector<8x32xf32>, vector<32x128xf32>, vector<8x128xf32> -> vector<8x128xf32>
    %37 = vector.broadcast %1 : vector<1x128xf32> to vector<8x128xf32>
    %38 = arith.addf %36, %37 : vector<8x128xf32>
    %39 = math.tanh %38 : vector<8x128xf32>
    %40 = vector.broadcast %2 : vector<1x128xf32> to vector<8x128xf32>
    %41 = arith.mulf %39, %40 : vector<8x128xf32>
    %cst_14 = arith.constant dense<0.000000e+00> : vector<8xf32>
    %42 = vector.multi_reduction <add>, %41, %cst_14 [1] : vector<8x128xf32> to vector<8xf32>
    %43 = vector.shape_cast %42 : vector<8xf32> to vector<8x1xf32>
    %cst_15 = arith.constant dense<0.000000e+00> : vector<8x128xf32>
    %44 = tpu.matmul %19, %0, %cst_15 {dimension_numbers = #tpu.dot_dimension_numbers<[1], [0], [0], [1], [0, 0, 1, 1], [], []>} : vector<8x32xf32>, vector<32x128xf32>, vector<8x128xf32> -> vector<8x128xf32>
    %45 = vector.broadcast %1 : vector<1x128xf32> to vector<8x128xf32>
    %46 = arith.addf %44, %45 : vector<8x128xf32>
    %47 = math.tanh %46 : vector<8x128xf32>
    %48 = vector.broadcast %2 : vector<1x128xf32> to vector<8x128xf32>
    %49 = arith.mulf %47, %48 : vector<8x128xf32>
    %cst_16 = arith.constant dense<0.000000e+00> : vector<8xf32>
    %50 = vector.multi_reduction <add>, %49, %cst_16 [1] : vector<8x128xf32> to vector<8xf32>
    %51 = vector.shape_cast %50 : vector<8xf32> to vector<8x1xf32>
    %52 = arith.maximumf %27, %35 : vector<8x1xf32>
    %53 = arith.maximumf %52, %43 : vector<8x1xf32>
    %54 = arith.maximumf %53, %51 : vector<8x1xf32>
    %55 = arith.subf %27, %54 : vector<8x1xf32>
    %56 = math.exp %55 : vector<8x1xf32>
    %57 = arith.subf %35, %54 : vector<8x1xf32>
    %58 = math.exp %57 : vector<8x1xf32>
    %59 = arith.subf %43, %54 : vector<8x1xf32>
    %60 = math.exp %59 : vector<8x1xf32>
    %61 = arith.subf %51, %54 : vector<8x1xf32>
    %62 = math.exp %61 : vector<8x1xf32>
    %63 = arith.addf %56, %58 : vector<8x1xf32>
    %64 = arith.addf %63, %60 : vector<8x1xf32>
    %65 = arith.addf %64, %62 : vector<8x1xf32>
    %cst_17 = arith.constant 1.000000e+00 : f32
    %66 = vector.broadcast %cst_17 : f32 to vector<8x1xf32>
    %67 = arith.divf %66, %65 : vector<8x1xf32>
    %68 = arith.mulf %56, %67 : vector<8x1xf32>
    %69 = arith.mulf %58, %67 : vector<8x1xf32>
    %70 = arith.mulf %60, %67 : vector<8x1xf32>
    %71 = arith.mulf %62, %67 : vector<8x1xf32>
    %72 = vector.broadcast %68 : vector<8x1xf32> to vector<8x32xf32>
    %73 = arith.mulf %72, %10 : vector<8x32xf32>
    %74 = vector.broadcast %69 : vector<8x1xf32> to vector<8x32xf32>
    %75 = arith.mulf %74, %13 : vector<8x32xf32>
    %76 = arith.addf %73, %75 : vector<8x32xf32>
    %77 = vector.broadcast %70 : vector<8x1xf32> to vector<8x32xf32>
    %78 = arith.mulf %77, %16 : vector<8x32xf32>
    %79 = arith.addf %76, %78 : vector<8x32xf32>
    %80 = vector.broadcast %71 : vector<8x1xf32> to vector<8x32xf32>
    %81 = arith.mulf %80, %19 : vector<8x32xf32>
    %82 = arith.addf %79, %81 : vector<8x32xf32>
    %83 = arith.index_cast %5 : i32 to index
    %c0_18 = arith.constant 0 : index
    %84 = vector.load %arg5[%83, %c0_18] : memref<8x32xf32, #tpu.memory_space<vmem>>, vector<8x32xf32>
    tpu.vector_store %arg5[%83, %c0_18], %82 {strides = array<i32>} : memref<8x32xf32, #tpu.memory_space<vmem>>, vector<8x32xf32>,
    %cst_19 = arith.constant 0.000000e+00 : f32
    %85 = vector.broadcast %cst_19 : f32 to vector<8x128xf32>
    %c0_i32_20 = arith.constant 0 : i32
    %86 = vector.broadcast %c0_i32_20 : i32 to vector<8x128xi32>
    %87 = arith.cmpi eq, %3, %86 : vector<8x128xi32>
    %88 = vector.shape_cast %68 : vector<8x1xf32> to vector<8x1xf32>
    %89 = vector.broadcast %88 : vector<8x1xf32> to vector<8x128xf32>
    %90 = arith.select %87, %89, %85 : vector<8x128xi1>, vector<8x128xf32>
    %c1_i32_21 = arith.constant 1 : i32
    %91 = vector.broadcast %c1_i32_21 : i32 to vector<8x128xi32>
    %92 = arith.cmpi eq, %3, %91 : vector<8x128xi32>
    %93 = vector.shape_cast %69 : vector<8x1xf32> to vector<8x1xf32>
    %94 = vector.broadcast %93 : vector<8x1xf32> to vector<8x128xf32>
    %95 = arith.select %92, %94, %90 : vector<8x128xi1>, vector<8x128xf32>
    %c2_i32_22 = arith.constant 2 : i32
    %96 = vector.broadcast %c2_i32_22 : i32 to vector<8x128xi32>
    %97 = arith.cmpi eq, %3, %96 : vector<8x128xi32>
    %98 = vector.shape_cast %70 : vector<8x1xf32> to vector<8x1xf32>
    %99 = vector.broadcast %98 : vector<8x1xf32> to vector<8x128xf32>
    %100 = arith.select %97, %99, %95 : vector<8x128xi1>, vector<8x128xf32>
    %c3_i32_23 = arith.constant 3 : i32
    %101 = vector.broadcast %c3_i32_23 : i32 to vector<8x128xi32>
    %102 = arith.cmpi eq, %3, %101 : vector<8x128xi32>
    %103 = vector.shape_cast %71 : vector<8x1xf32> to vector<8x1xf32>
    %104 = vector.broadcast %103 : vector<8x1xf32> to vector<8x128xf32>
    %105 = arith.select %102, %104, %100 : vector<8x128xi1>, vector<8x128xf32>
    %106 = arith.index_cast %5 : i32 to index
    %c0_24 = arith.constant 0 : index
    %107 = vector.load %arg6[%106, %c0_24] : memref<8x128xf32, #tpu.memory_space<vmem>>, vector<8x128xf32>
    tpu.vector_store %arg6[%106, %c0_24], %105 {strides = array<i32>} : memref<8x128xf32, #tpu.memory_space<vmem>>, vector<8x128xf32>,
    %c1_i32_25 = arith.constant 1 : i32
    return
  }
  func.func @transform_0(%arg0: i32) -> (i32, i32) {
    %c0_i32 = arith.constant 0 : i32
    %c0_i32_0 = arith.constant 0 : i32
    return %arg0, %c0_i32 : i32, i32
  }
  func.func @transform_1(%arg0: i32) -> (i32, i32) {
    %c0_i32 = arith.constant 0 : i32
    %c0_i32_0 = arith.constant 0 : i32
    %c0_i32_1 = arith.constant 0 : i32
    return %c0_i32, %c0_i32_0 : i32, i32
  }
  func.func @transform_2(%arg0: i32) -> (i32, i32) {
    %c0_i32 = arith.constant 0 : i32
    %c0_i32_0 = arith.constant 0 : i32
    %c0_i32_1 = arith.constant 0 : i32
    return %c0_i32, %c0_i32_0 : i32, i32
  }
  func.func @transform_3(%arg0: i32) -> (i32, i32) {
    %c0_i32 = arith.constant 0 : i32
    %c0_i32_0 = arith.constant 0 : i32
    %c0_i32_1 = arith.constant 0 : i32
    return %c0_i32, %c0_i32_0 : i32, i32
  }
  func.func @transform_4(%arg0: i32) -> (i32, i32) {
    %c0_i32 = arith.constant 0 : i32
    %c0_i32_0 = arith.constant 0 : i32
    return %arg0, %c0_i32 : i32, i32
  }
  func.func @transform_5(%arg0: i32) -> (i32, i32) {
    %c0_i32 = arith.constant 0 : i32
    %c0_i32_0 = arith.constant 0 : i32
    return %arg0, %c0_i32 : i32, i32
  }
}

</mosaic_0001>

<llo_original>
// kernel: tpu_custom_call.1
$region0: #{tpu_custom_call.1}
  #allocation0 [shape = 'u32[]', space=smem, size = 0x4, offset = 0x4, fixed_abs, tag = 'smem constant byte address 0x4 - core index']
  #allocation1 [shape = 'u32[144,128]{1,0:T(1,128)}', space=vmem, size = 0x12000, scoped, tag = 'internal scratch']
  %s0 = inlined_call_operand.hbm [shape: f32[32,32], index: 0, kind: input, shape index: {}]
  %s1 = inlined_call_operand.hbm [shape: f32[32,128], index: 1, kind: input, shape index: {}]
  %s2 = inlined_call_operand.vmem [shape: f32[1,128], index: 2, kind: input, shape index: {}]
  %s3 = inlined_call_operand.vmem [shape: f32[1,128], index: 3, kind: input, shape index: {}]
  %s4 = inlined_call_operand.hbm [shape: f32[8,32], index: 4, kind: output, shape index: {0}]
  %s5 = inlined_call_operand.hbm [shape: f32[8,128], index: 5, kind: output, shape index: {1}]
  %6 = xla_tuple %s4, %s5
  %s7 = sld [smem:[#allocation0]]
  $region42: #{tpu_custom_call.1} parent=0
    _
  %s9 = ssub.s32 1, %s7
  %s10 = scalar_select 0, %s9, %s7
  $region1: #{tpu_custom_call.1} parent=0
    #allocation2 [shape = 'u8[16384]{0}', space=vmem, size = 0x4000, scoped, tag = 'input window, operand 0, single buffered']
    #allocation3 [shape = 's32[1]{0}', space=sflag, size = 0x4, scoped, tag = 'scoped memory for tpu_custom_call.1']
    #allocation4 [shape = 's32[1]{0}', space=sflag, size = 0x4, scoped, tag = 'scoped memory for tpu_custom_call.1']
    #allocation5 [shape = 'u8[16384]{0}', space=vmem, size = 0x4000, scoped, tag = 'input window, operand 1, single buffered']
    #allocation6 [shape = 's32[1]{0}', space=sflag, size = 0x4, scoped, tag = 'scoped memory for tpu_custom_call.1']
    #allocation7 [shape = 'u8[4096]{0}', space=vmem, size = 0x1000, scoped, tag = 'output window, operand 0, single buffered']
    #allocation8 [shape = 'u8[4096]{0}', space=vmem, size = 0x1000, scoped, tag = 'output window, operand 1, single buffered']
    #allocation9 [shape = 's32[1]{0}', space=sflag, size = 0x4, scoped, tag = 'scoped memory for tpu_custom_call.1']
    %11 = vsyncpa [#allocation3], 0
    %12 = vsyncpa [#allocation6], 0
    %13 = vsyncpa [#allocation4], 0
    %14 = vsyncpa [#allocation9], 0
    // Predicated region
    $region2: #{tpu_custom_call.1} parent=1 // pred_check
      _
    $region3: #{tpu_custom_call.1} parent=1 // pred_check_branch
      %16 = sbr.rel (0) target = $region5
    $region4: #{tpu_custom_call.1} parent=1 // pred_region
      %s18 = ssub.s32 512, 512
      %19 = vsyncadd [#allocation3], %s18
      %s20 = sshll.u32 [#allocation2], 4
      %s21 = int_to_ptr.vmem [resolvable:$true] %s20
      %26 = dma.hbm_to_vmem [thread:$0]  %s0, 512, %s21, [#allocation3], 128, 128, 8
    $region5: #{tpu_custom_call.1} parent=1 // pred_fallthru
      _
    // Predicated region
    $region6: #{tpu_custom_call.1} parent=1 // pred_check
      _
    $region7: #{tpu_custom_call.1} parent=1 // pred_check_branch
      %28 = sbr.rel (0) target = $region9
    $region8: #{tpu_custom_call.1} parent=1 // pred_region
      %s30 = ssub.s32 512, 512
      %31 = vsyncadd [#allocation6], %s30
      %s32 = sshll.u32 [#allocation5], 4
      %s33 = int_to_ptr.vmem [resolvable:$true] %s32
      %38 = dma.hbm_to_vmem [thread:$0]  %s1, 512, %s33, [#allocation6], 128, 128, 8
    $region9: #{tpu_custom_call.1} parent=1 // pred_fallthru
      _
    // Predicated region
    $region10: #{tpu_custom_call.1} parent=1 // pred_check
      _
    $region11: #{tpu_custom_call.1} parent=1 // pred_check_branch
      %40 = sbr.rel (0) target = $region13
    $region12: #{tpu_custom_call.1} parent=1 // pred_region
      _
    $region13: #{tpu_custom_call.1} parent=1 // pred_fallthru
      _
    // Predicated region
    $region14: #{tpu_custom_call.1} parent=1 // pred_check
      _
    $region15: #{tpu_custom_call.1} parent=1 // pred_check_branch
      %42 = sbr.rel (0) target = $region17
    $region16: #{tpu_custom_call.1} parent=1 // pred_region
      _
    $region17: #{tpu_custom_call.1} parent=1 // pred_fallthru
      _
    // Predicated region
    $region18: #{tpu_custom_call.1} parent=1 // pred_check
      _
    $region19: #{tpu_custom_call.1} parent=1 // pred_check_branch
      %44 = sbr.rel (0) target = $region21
    $region20: #{tpu_custom_call.1} parent=1 // pred_region
      %45 = dma.done [#allocation3], 512
    $region21: #{tpu_custom_call.1} parent=1 // pred_fallthru
      _
    // Predicated region
    $region22: #{tpu_custom_call.1} parent=1 // pred_check
      _
    $region23: #{tpu_custom_call.1} parent=1 // pred_check_branch
      %47 = sbr.rel (0) target = $region25
    $region24: #{tpu_custom_call.1} parent=1 // pred_region
      %48 = dma.done [#allocation6], 512
    $region25: #{tpu_custom_call.1} parent=1 // pred_fallthru
      _
    %v49 = vld [vmem:[#allocation5] sm:$0xff]
    %v50 = vld [vmem:[#allocation5 + $0x8] sm:$0xff]
    %v51 = vld [vmem:[#allocation5 + $0x10] sm:$0xff]
    %v52 = vld [vmem:[#allocation5 + $0x18] sm:$0xff]
    %v53 = vld [vmem:[%s2] sm:$0x1]
    %v54 = vld [vmem:[%s3] sm:$0x1]
    %v55 = vlaneseq
    %v56 = vand.u32 %v55, 127
    %v57 = vld [vmem:[#allocation2] ss:$4 sm:$0xff]
    %s58 = sadd.s32 0, 1
    %s59 = scalar_lea.vmem [#allocation2], %s58
    %v60 = vld [vmem:[%s59] ss:$4 sm:$0xff]
    %s61 = sadd.s32 0, 2
    %s62 = scalar_lea.vmem [#allocation2], %s61
    %v63 = vld [vmem:[%s62] ss:$4 sm:$0xff]
    %s64 = sadd.s32 0, 3
    %s65 = scalar_lea.vmem [#allocation2], %s64
    %v66 = vld [vmem:[%s65] ss:$4 sm:$0xff]
    %v68 = vlaneseq
    %v69 = vshrl.u32 %v68, 7
    %v70 = vsub.s32 0, %v69
    %v71 = vrot.slane %v53, %v70
    %vm73 = vcmask 261120
    %v75 = vsel %vm73, %v57, 0
    %77 = vmatprep.subr.mxu0 0.0
    %78 = vmatpush1.msra.mxu0 %v49
    %79 = vmatprep.subr.mxu0 0.0
    %80 = vmatpush1.msra.mxu0 %v50
    %81 = vmatprep.subr.mxu0 0.0
    %82 = vmatpush1.msra.mxu0 %v51
    %83 = vmatprep.subr.mxu0 0.0
    %84 = vmatpush1.msra.mxu0 %v52
    %85 = vmatprep.subr.mxu0 0.0
    %86 = vmatpush1.msra.mxu0 0.0
    %87 = vmatprep.subr.mxu0 0.0
    %88 = vmatpush1.msra.mxu0 0.0
    %89 = vmatprep.subr.mxu0 0.0
    %90 = vmatpush1.msra.mxu0 0.0
    %91 = vmatprep.subr.mxu0 0.0
    %92 = vmatpush1.msra.mxu0 0.0
    %93 = vmatprep.subr.mxu0 0.0
    %94 = vmatpush1.msra.mxu0 0.0
    %95 = vmatprep.subr.mxu0 0.0
    %96 = vmatpush1.msra.mxu0 0.0
    %97 = vmatprep.subr.mxu0 0.0
    %98 = vmatpush1.msra.mxu0 0.0
    %99 = vmatprep.subr.mxu0 0.0
    %100 = vmatpush1.msra.mxu0 0.0
    %101 = vmatprep.subr.mxu0 0.0
    %102 = vmatpush1.msra.mxu0 0.0
    %103 = vmatprep.subr.mxu0 0.0
    %104 = vmatpush1.msra.mxu0 0.0
    %105 = vmatprep.subr.mxu0 0.0
    %106 = vmatpush1.msra.mxu0 0.0
    %107 = vmatprep.subr.mxu0 0.0
    %108 = vmatpush1.msra.mxu0 0.0
    %109 = vmatprep.subr.mxu0 0.0
    %110 = vmatpush1.msra.mxu0 0.0
    %111 = vmatprep.subr.mxu0 0.0
    %112 = vmatpush1.msra.mxu0 0.0
    %113 = vmatprep.subr.mxu0 0.0
    %114 = vmatpush1.msra.mxu0 0.0
    %115 = vmatprep.subr.mxu0 0.0
    %116 = vmatpush1.msra.mxu0 0.0
    %117 = vmatprep.subr.mxu0 0.0
    %118 = vmatpush1.msra.mxu0 0.0
    %119 = vmatprep.subr.mxu0 0.0
    %120 = vmatpush1.msra.mxu0 0.0
    %121 = vmatprep.subr.mxu0 0.0
    %122 = vmatpush1.msra.mxu0 0.0
    %123 = vmatprep.subr.mxu0 0.0
    %124 = vmatpush1.msra.mxu0 0.0
    %125 = vmatprep.subr.mxu0 0.0
    %126 = vmatpush1.msra.mxu0 0.0
    %127 = vmatprep.subr.mxu0 0.0
    %128 = vmatpush1.msra.mxu0 0.0
    %129 = vmatprep.subr.mxu0 0.0
    %130 = vmatpush1.msra.mxu0 0.0
    %131 = vmatprep.subr.mxu0 0.0
    %132 = vmatpush1.msra.mxu0 0.0
    %133 = vmatprep.subr.mxu0 0.0
    %134 = vmatpush1.msra.mxu0 0.0
    %135 = vmatprep.subr.mxu0 0.0
    %136 = vmatpush1.msra.mxu0 0.0
    %137 = vmatprep.subr.mxu0 0.0
    %138 = vmatpush1.msra.mxu0 0.0
    %139 = vmatprep.subr.mxu0 0.0
    %140 = vmatpush1.msra.mxu0 0.0
    %141 = vmatprep.mubr.f32.mxu0 0.0
    %142 = vmatmul.mubr.f32.gmra.mrb[0].mxu0 %v75
    %v143 = vpop.f32.mrb[0].mxu0
    %v144 = vadd.f32 %v71, %v143
    %v145 = vpop.f32.mrb[0].mxu0
    %146 = vdwg.mxu0
    %v147 = vtanh.pop %v144
    %v149 = vlaneseq
    %v150 = vshrl.u32 %v149, 7
    %v151 = vsub.s32 0, %v150
    %v152 = vrot.slane %v54, %v151
    %v154 = vmul.f32 %v147, %v152
    %155 = vadd.xlane.f32.xlu0 %v154
    %v156 = vpop.xlane.xlu0 %155
    %v158 = vsel %vm73, %v60, 0
    %160 = vmatprep.subr.mxu0 0.0
    %161 = vmatpush1.msra.mxu0 %v49
    %162 = vmatprep.subr.mxu0 0.0
    %163 = vmatpush1.msra.mxu0 %v50
    %164 = vmatprep.subr.mxu0 0.0
    %165 = vmatpush1.msra.mxu0 %v51
    %166 = vmatprep.subr.mxu0 0.0
    %167 = vmatpush1.msra.mxu0 %v52
    %168 = vmatprep.subr.mxu0 0.0
    %169 = vmatpush1.msra.mxu0 0.0
    %170 = vmatprep.subr.mxu0 0.0
    %171 = vmatpush1.msra.mxu0 0.0
    %172 = vmatprep.subr.mxu0 0.0
    %173 = vmatpush1.msra.mxu0 0.0
    %174 = vmatprep.subr.mxu0 0.0
    %175 = vmatpush1.msra.mxu0 0.0
    %176 = vmatprep.subr.mxu0 0.0
    %177 = vmatpush1.msra.mxu0 0.0
    %178 = vmatprep.subr.mxu0 0.0
    %179 = vmatpush1.msra.mxu0 0.0
    %180 = vmatprep.subr.mxu0 0.0
    %181 = vmatpush1.msra.mxu0 0.0
    %182 = vmatprep.subr.mxu0 0.0
    %183 = vmatpush1.msra.mxu0 0.0
    %184 = vmatprep.subr.mxu0 0.0
    %185 = vmatpush1.msra.mxu0 0.0
    %186 = vmatprep.subr.mxu0 0.0
    %187 = vmatpush1.msra.mxu0 0.0
    %188 = vmatprep.subr.mxu0 0.0
    %189 = vmatpush1.msra.mxu0 0.0
    %190 = vmatprep.subr.mxu0 0.0
    %191 = vmatpush1.msra.mxu0 0.0
    %192 = vmatprep.subr.mxu0 0.0
    %193 = vmatpush1.msra.mxu0 0.0
    %194 = vmatprep.subr.mxu0 0.0
    %195 = vmatpush1.msra.mxu0 0.0
    %196 = vmatprep.subr.mxu0 0.0
    %197 = vmatpush1.msra.mxu0 0.0
    %198 = vmatprep.subr.mxu0 0.0
    %199 = vmatpush1.msra.mxu0 0.0
    %200 = vmatprep.subr.mxu0 0.0
    %201 = vmatpush1.msra.mxu0 0.0
    %202 = vmatprep.subr.mxu0 0.0
    %203 = vmatpush1.msra.mxu0 0.0
    %204 = vmatprep.subr.mxu0 0.0
    %205 = vmatpush1.msra.mxu0 0.0
    %206 = vmatprep.subr.mxu0 0.0
    %207 = vmatpush1.msra.mxu0 0.0
    %208 = vmatprep.subr.mxu0 0.0
    %209 = vmatpush1.msra.mxu0 0.0
    %210 = vmatprep.subr.mxu0 0.0
    %211 = vmatpush1.msra.mxu0 0.0
    %212 = vmatprep.subr.mxu0 0.0
    %213 = vmatpush1.msra.mxu0 0.0
    %214 = vmatprep.subr.mxu0 0.0
    %215 = vmatpush1.msra.mxu0 0.0
    %216 = vmatprep.subr.mxu0 0.0
    %217 = vmatpush1.msra.mxu0 0.0
    %218 = vmatprep.subr.mxu0 0.0
    %219 = vmatpush1.msra.mxu0 0.0
    %220 = vmatprep.subr.mxu0 0.0
    %221 = vmatpush1.msra.mxu0 0.0
    %222 = vmatprep.subr.mxu0 0.0
    %223 = vmatpush1.msra.mxu0 0.0
    %224 = vmatprep.mubr.f32.mxu0 0.0
    %225 = vmatmul.mubr.f32.gmra.mrb[0].mxu0 %v158
    %v226 = vpop.f32.mrb[0].mxu0
    %v227 = vadd.f32 %v71, %v226
    %v228 = vpop.f32.mrb[0].mxu0
    %229 = vdwg.mxu0
    %v230 = vtanh.pop %v227
    %v231 = vmul.f32 %v230, %v152
    %232 = vadd.xlane.f32.xlu0 %v231
    %v233 = vpop.xlane.xlu0 %232
    %v235 = vsel %vm73, %v63, 0
    %237 = vmatprep.subr.mxu0 0.0
    %238 = vmatpush1.msra.mxu0 %v49
    %239 = vmatprep.subr.mxu0 0.0
    %240 = vmatpush1.msra.mxu0 %v50
    %241 = vmatprep.subr.mxu0 0.0
    %242 = vmatpush1.msra.mxu0 %v51
    %243 = vmatprep.subr.mxu0 0.0
    %244 = vmatpush1.msra.mxu0 %v52
    %245 = vmatprep.subr.mxu0 0.0
    %246 = vmatpush1.msra.mxu0 0.0
    %247 = vmatprep.subr.mxu0 0.0
    %248 = vmatpush1.msra.mxu0 0.0
    %249 = vmatprep.subr.mxu0 0.0
    %250 = vmatpush1.msra.mxu0 0.0
    %251 = vmatprep.subr.mxu0 0.0
    %252 = vmatpush1.msra.mxu0 0.0
    %253 = vmatprep.subr.mxu0 0.0
    %254 = vmatpush1.msra.mxu0 0.0
    %255 = vmatprep.subr.mxu0 0.0
    %256 = vmatpush1.msra.mxu0 0.0
    %257 = vmatprep.subr.mxu0 0.0
    %258 = vmatpush1.msra.mxu0 0.0
    %259 = vmatprep.subr.mxu0 0.0
    %260 = vmatpush1.msra.mxu0 0.0
    %261 = vmatprep.subr.mxu0 0.0
    %262 = vmatpush1.msra.mxu0 0.0
    %263 = vmatprep.subr.mxu0 0.0
    %264 = vmatpush1.msra.mxu0 0.0
    %265 = vmatprep.subr.mxu0 0.0
    %266 = vmatpush1.msra.mxu0 0.0
    %267 = vmatprep.subr.mxu0 0.0
    %268 = vmatpush1.msra.mxu0 0.0
    %269 = vmatprep.subr.mxu0 0.0
    %270 = vmatpush1.msra.mxu0 0.0
    %271 = vmatprep.subr.mxu0 0.0
    %272 = vmatpush1.msra.mxu0 0.0
    %273 = vmatprep.subr.mxu0 0.0
    %274 = vmatpush1.msra.mxu0 0.0
    %275 = vmatprep.subr.mxu0 0.0
    %276 = vmatpush1.msra.mxu0 0.0
    %277 = vmatprep.subr.mxu0 0.0
    %278 = vmatpush1.msra.mxu0 0.0
    %279 = vmatprep.subr.mxu0 0.0
    %280 = vmatpush1.msra.mxu0 0.0
    %281 = vmatprep.subr.mxu0 0.0
    %282 = vmatpush1.msra.mxu0 0.0
    %283 = vmatprep.subr.mxu0 0.0
    %284 = vmatpush1.msra.mxu0 0.0
    %285 = vmatprep.subr.mxu0 0.0
    %286 = vmatpush1.msra.mxu0 0.0
    %287 = vmatprep.subr.mxu0 0.0
    %288 = vmatpush1.msra.mxu0 0.0
    %289 = vmatprep.subr.mxu0 0.0
    %290 = vmatpush1.msra.mxu0 0.0
    %291 = vmatprep.subr.mxu0 0.0
    %292 = vmatpush1.msra.mxu0 0.0
    %293 = vmatprep.subr.mxu0 0.0
    %294 = vmatpush1.msra.mxu0 0.0
    %295 = vmatprep.subr.mxu0 0.0
    %296 = vmatpush1.msra.mxu0 0.0
    %297 = vmatprep.subr.mxu0 0.0
    %298 = vmatpush1.msra.mxu0 0.0
    %299 = vmatprep.subr.mxu0 0.0
    %300 = vmatpush1.msra.mxu0 0.0
    %301 = vmatprep.mubr.f32.mxu0 0.0
    %302 = vmatmul.mubr.f32.gmra.mrb[0].mxu0 %v235
    %v303 = vpop.f32.mrb[0].mxu0
    %v304 = vadd.f32 %v71, %v303
    %v305 = vpop.f32.mrb[0].mxu0
    %306 = vdwg.mxu0
    %v307 = vtanh.pop %v304
    %v308 = vmul.f32 %v307, %v152
    %309 = vadd.xlane.f32.xlu0 %v308
    %v310 = vpop.xlane.xlu0 %309
    %v312 = vsel %vm73, %v66, 0
    %314 = vmatprep.subr.mxu0 0.0
    %315 = vmatpush1.msra.mxu0 %v49
    %316 = vmatprep.subr.mxu0 0.0
    %317 = vmatpush1.msra.mxu0 %v50
    %318 = vmatprep.subr.mxu0 0.0
    %319 = vmatpush1.msra.mxu0 %v51
    %320 = vmatprep.subr.mxu0 0.0
    %321 = vmatpush1.msra.mxu0 %v52
    %322 = vmatprep.subr.mxu0 0.0
    %323 = vmatpush1.msra.mxu0 0.0
    %324 = vmatprep.subr.mxu0 0.0
    %325 = vmatpush1.msra.mxu0 0.0
    %326 = vmatprep.subr.mxu0 0.0
    %327 = vmatpush1.msra.mxu0 0.0
    %328 = vmatprep.subr.mxu0 0.0
    %329 = vmatpush1.msra.mxu0 0.0
    %330 = vmatprep.subr.mxu0 0.0
    %331 = vmatpush1.msra.mxu0 0.0
    %332 = vmatprep.subr.mxu0 0.0
    %333 = vmatpush1.msra.mxu0 0.0
    %334 = vmatprep.subr.mxu0 0.0
    %335 = vmatpush1.msra.mxu0 0.0
    %336 = vmatprep.subr.mxu0 0.0
    %337 = vmatpush1.msra.mxu0 0.0
    %338 = vmatprep.subr.mxu0 0.0
    %339 = vmatpush1.msra.mxu0 0.0
    %340 = vmatprep.subr.mxu0 0.0
    %341 = vmatpush1.msra.mxu0 0.0
    %342 = vmatprep.subr.mxu0 0.0
    %343 = vmatpush1.msra.mxu0 0.0
    %344 = vmatprep.subr.mxu0 0.0
    %345 = vmatpush1.msra.mxu0 0.0
    %346 = vmatprep.subr.mxu0 0.0
    %347 = vmatpush1.msra.mxu0 0.0
    %348 = vmatprep.subr.mxu0 0.0
    %349 = vmatpush1.msra.mxu0 0.0
    %350 = vmatprep.subr.mxu0 0.0
    %351 = vmatpush1.msra.mxu0 0.0
    %352 = vmatprep.subr.mxu0 0.0
    %353 = vmatpush1.msra.mxu0 0.0
    %354 = vmatprep.subr.mxu0 0.0
    %355 = vmatpush1.msra.mxu0 0.0
    %356 = vmatprep.subr.mxu0 0.0
    %357 = vmatpush1.msra.mxu0 0.0
    %358 = vmatprep.subr.mxu0 0.0
    %359 = vmatpush1.msra.mxu0 0.0
    %360 = vmatprep.subr.mxu0 0.0
    %361 = vmatpush1.msra.mxu0 0.0
    %362 = vmatprep.subr.mxu0 0.0
    %363 = vmatpush1.msra.mxu0 0.0
    %364 = vmatprep.subr.mxu0 0.0
    %365 = vmatpush1.msra.mxu0 0.0
    %366 = vmatprep.subr.mxu0 0.0
    %367 = vmatpush1.msra.mxu0 0.0
    %368 = vmatprep.subr.mxu0 0.0
    %369 = vmatpush1.msra.mxu0 0.0
    %370 = vmatprep.subr.mxu0 0.0
    %371 = vmatpush1.msra.mxu0 0.0
    %372 = vmatprep.subr.mxu0 0.0
    %373 = vmatpush1.msra.mxu0 0.0
    %374 = vmatprep.subr.mxu0 0.0
    %375 = vmatpush1.msra.mxu0 0.0
    %376 = vmatprep.subr.mxu0 0.0
    %377 = vmatpush1.msra.mxu0 0.0
    %378 = vmatprep.mubr.f32.mxu0 0.0
    %379 = vmatmul.mubr.f32.gmra.mrb[0].mxu0 %v312
    %v380 = vpop.f32.mrb[0].mxu0
    %v381 = vadd.f32 %v71, %v380
    %v382 = vpop.f32.mrb[0].mxu0
    %383 = vdwg.mxu0
    %v384 = vtanh.pop %v381
    %v385 = vmul.f32 %v384, %v152
    %386 = vadd.xlane.f32.xlu0 %v385
    %v387 = vpop.xlane.xlu0 %386
    %v388 = vmax.f32 %v156, %v233
    %v389 = vmax.f32 %v388, %v310
    %v390 = vmax.f32 %v389, %v387
    %v391 = vsub.f32 %v156, %v390
    %v392 = vmul.f32 %v391, 1.442695
    %v393 = vpow.pop %v392
    %v394 = vsub.f32 %v233, %v390
    %v395 = vmul.f32 %v394, 1.442695
    %v396 = vpow.pop %v395
    %v397 = vsub.f32 %v310, %v390
    %v398 = vmul.f32 %v397, 1.442695
    %v399 = vpow.pop %v398
    %v400 = vsub.f32 %v387, %v390
    %v401 = vmul.f32 %v400, 1.442695
    %v402 = vpow.pop %v401
    %v403 = vadd.f32 %v393, %v396
    %v404 = vadd.f32 %v403, %v399
    %v405 = vadd.f32 %v404, %v402
    %v406 = vrcp.pop %v405
    %v407 = vmul.f32 1.0, %v406
    %v408 = vmul.f32 %v393, %v407
    %v409 = vmul.f32 %v396, %v407
    %v410 = vmul.f32 %v399, %v407
    %v411 = vmul.f32 %v402, %v407
    %v412 = vmul.f32 %v408, %v57
    %v413 = vmul.f32 %v409, %v60
    %v414 = vadd.f32 %v412, %v413
    %v415 = vmul.f32 %v410, %v63
    %v416 = vadd.f32 %v414, %v415
    %v417 = vmul.f32 %v411, %v66
    %v418 = vadd.f32 %v416, %v417
    %419 = vst.msk [vmem:[#allocation7] sm:$0xff] %vm73, %v418
    %vm420 = vcmp.eq.s32.totalorder %v56, 0
    %v421 = vsel %vm420, %v408, 0.0
    %vm422 = vcmp.eq.s32.totalorder %v56, 1
    %v423 = vsel %vm422, %v409, %v421
    %vm424 = vcmp.eq.s32.totalorder %v56, 2
    %v425 = vsel %vm424, %v410, %v423
    %vm426 = vcmp.eq.s32.totalorder %v56, 3
    %v427 = vsel %vm426, %v411, %v425
    %428 = vst [vmem:[#allocation8] sm:$0xff] %v427
    // Predicated region
    $region26: #{tpu_custom_call.1} parent=1 // pred_check
      _
    $region27: #{tpu_custom_call.1} parent=1 // pred_check_branch
      %430 = sbr.rel (0) target = $region29
    $region28: #{tpu_custom_call.1} parent=1 // pred_region
      %s432 = ssub.s32 128, 128
      %433 = vsyncadd [#allocation4], %s432
      %s435 = sshll.u32 [#allocation7], 4
      %s436 = int_to_ptr.vmem [resolvable:$true] %s435
      %438 = dma.vmem_to_hbm [thread:$0]  %s436, 128, %s4, [#allocation4]
    $region29: #{tpu_custom_call.1} parent=1 // pred_fallthru
      _
    // Predicated region
    $region30: #{tpu_custom_call.1} parent=1 // pred_check
      _
    $region31: #{tpu_custom_call.1} parent=1 // pred_check_branch
      %440 = sbr.rel (0) target = $region33
    $region32: #{tpu_custom_call.1} parent=1 // pred_region
      %s442 = ssub.s32 128, 128
      %443 = vsyncadd [#allocation9], %s442
      %s445 = sshll.u32 [#allocation8], 4
      %s446 = int_to_ptr.vmem [resolvable:$true] %s445
      %448 = dma.vmem_to_hbm [thread:$0]  %s446, 128, %s5, [#allocation9]
    $region33: #{tpu_custom_call.1} parent=1 // pred_fallthru
      _
    // Predicated region
    $region34: #{tpu_custom_call.1} parent=1 // pred_check
      _
    $region35: #{tpu_custom_call.1} parent=1 // pred_check_branch
      %450 = sbr.rel (0) target = $region37
    $region36: #{tpu_custom_call.1} parent=1 // pred_region
      %451 = dma.done [#allocation4], 128
    $region37: #{tpu_custom_call.1} parent=1 // pred_fallthru
      _
    // Predicated region
    $region38: #{tpu_custom_call.1} parent=1 // pred_check
      _
    $region39: #{tpu_custom_call.1} parent=1 // pred_check_branch
      %453 = sbr.rel (0) target = $region41
    $region40: #{tpu_custom_call.1} parent=1 // pred_region
      %454 = dma.done [#allocation9], 128
    $region41: #{tpu_custom_call.1} parent=1 // pred_fallthru
      _
    %455 = vsyncpa [#allocation3], 1
    %456 = vsyncpa [#allocation6], 1
    %457 = vsyncpa [#allocation4], 1
    %458 = vsyncpa [#allocation9], 1

</llo_original>
